<compile_context>
chip_gen: v7x
topology: tpu7x:2x2x1
jax: 0.10.0
libtpu: 0.0.40
codegen_flags: <defaults>
</compile_context>

<pallas_src>
import functools
import math

import jax
import jax.numpy as jnp
from jax.experimental import pallas as pl
from jax.experimental.pallas import tpu as pltpu


def _round_up(a, b):
    return ((a + b - 1) // b) * b


def _avg_pool_fc_kernel(batch_ref, x_ref, w_ref, y_ref, cnt_out_ref,
                        acc_ref, cnt_ref, *, n_nodes, mask_tail):
    # batch_ref  : (1, tn)         int32   graph id per node (invalid lanes masked below)
    # x_ref      : (tn, F)         f32/bf16 node-feature tile (streamed; last tile may be partial)
    # w_ref      : (C_pad, F)      f32     linear weight, torch-native [C, F] layout (resident)
    # y_ref      : (G_pad, C_pad)  f32     OUTPUT: per-split partial logits  sum_g(x) @ W^T
    # cnt_out_ref: (G_pad, 1)      f32     OUTPUT: per-split node counts
    # acc_ref    : (G_pad, F)      f32     scratch: per-graph feature sums
    # cnt_ref    : (G_pad, 1)      f32     scratch: per-graph node counts
    n = pl.program_id(1)

    @pl.when(n == 0)
    def _init():
        acc_ref[...] = jnp.zeros_like(acc_ref)
        cnt_ref[...] = jnp.zeros_like(cnt_ref)

    tn = x_ref.shape[0]
    G = acc_ref.shape[0]

    if mask_tail:
        # Logical (unclamped) tile index -> global node offset of this tile.  The masks
        # handle both the ragged last tile (stale VMEM rows beyond N) and fully
        # out-of-range tiles whose DMA block index was clamped in the index_map.
        tile = pl.program_id(0) * pl.num_programs(1) + n
        node_base = tile * tn
        lane_idx = node_base + jax.lax.broadcasted_iota(jnp.int32, (1, tn), 1)
        batch = jnp.where(lane_idx < n_nodes, batch_ref[...], -1)          # (1, tn)
        row_idx = node_base + jax.lax.broadcasted_iota(jnp.int32, (tn, 1), 0)
        x_tile = jnp.where(row_idx < n_nodes, x_ref[...],
                           jnp.zeros((), x_ref.dtype))                     # (tn, F)
    else:
        batch = batch_ref[...]
        x_tile = x_ref[...]

    # one_hot[g, i] = 1.0 iff node i of this tile belongs to graph g (masked lanes -> 0)
    g_ids = jax.lax.broadcasted_iota(jnp.int32, (G, tn), 0)
    one_hot = (g_ids == batch).astype(jnp.float32)                         # (G, tn)

    # accumulate node counts and per-graph feature sums (MXU, f32 accumulation)
    cnt_ref[...] += jnp.sum(one_hot, axis=1, keepdims=True)
    acc_ref[...] += jnp.dot(one_hot.astype(x_tile.dtype), x_tile,
                            preferred_element_type=jnp.float32)

    @pl.when(n == pl.num_programs(1) - 1)
    def _finalize():
        # FC on the per-split *sums*: contract the F axes; W stays torch-native [C, F].
        y_ref[...] = jax.lax.dot_general(
            acc_ref[...], w_ref[...],
            dimension_numbers=(((1,), (1,)), ((), ())),
            preferred_element_type=jnp.float32).astype(y_ref.dtype)        # (G_pad, C_pad)
        cnt_out_ref[...] = cnt_ref[...]


def avg_pool_fc(x, batch, weight, bias, num_graphs, *,
                tile_nodes=None, num_node_splits=2, x_buffer_count=2,
                vmem_limit_bytes=None):
    """global_mean_pool(x, batch) followed by Linear(weight, bias).

    x      : [N, F] node features (streamed in its own dtype; f32 or bf16)
    batch  : [N] int graph assignment, ids in [0, num_graphs)
    weight : [C, F] torch-native nn.Linear weight
    bias   : [C]
    returns: [num_graphs, C] float32
    """
    N, F = x.shape
    C = weight.shape[0]
    x_itemsize = jnp.dtype(x.dtype).itemsize

    G_pad = max(8, _round_up(num_graphs, 8))
    C_pad = max(8, _round_up(C, 8))

    # --- generation-aware VMEM budget: ~82% of physical VMEM -----------------------------
    # (~105 MiB on 128 MiB v5e/v6e parts, ~52 MiB on 64 MiB-per-TC v7x)
    if vmem_limit_bytes is None:
        try:
            vmem_cap = int(pltpu.get_tpu_info().vmem_capacity_bytes)
        except Exception:
            vmem_cap = 64 << 20
        vmem_limit_bytes = int(vmem_cap * 0.82)
    vmem_limit_bytes = int(vmem_limit_bytes)

    # --- node tile size: largest multiple of 128 whose multi-buffered x tiles fit the ----
    # budget next to the resident (double-buffered) weight and the f32 accumulator.
    resident = 2 * C_pad * F * 4          # weight f32, double-buffered even w/ constant map
    resident += G_pad * F * 4             # f32 feature-sum accumulator (scratch)
    headroom = 4 << 20                    # batch blocks, outputs, compiler internal scratch
    x_budget = vmem_limit_bytes - resident - headroom
    tn_vmem = x_budget // max(x_buffer_count * F * x_itemsize, 1)

    if tile_nodes is None:
        per_split = _round_up(pl.cdiv(N, max(num_node_splits, 1)), 128)
        tile_nodes = min(max(128, (tn_vmem // 128) * 128), 1024, per_split)
    tn = max(128, _round_up(int(tile_nodes), 128))

    n_tiles = pl.cdiv(N, tn)                               # total node tiles
    num_splits = max(1, min(int(num_node_splits), n_tiles))
    tiles_per_split = pl.cdiv(n_tiles, num_splits)
    last_tile = n_tiles - 1
    # any ragged last tile or clamped (duplicated) tiles must be masked in-kernel
    mask_tail = (N != n_tiles * tn) or (num_splits * tiles_per_split != n_tiles)

    # batch ids are tiny: pad to the tiled extent with -1 (never matches a graph id).
    N_pad = n_tiles * tn
    batch_p = jnp.full((1, N_pad), -1, jnp.int32).at[0, :N].set(batch.astype(jnp.int32))
    # weight padded C 10 -> 16 (sublane), kept in torch-native [C, F] (lane dim = big F axis)
    w_p = jnp.zeros((C_pad, F), jnp.float32).at[:C].set(weight.astype(jnp.float32))

    def batch_map(c, n):
        return (0, jnp.minimum(c * tiles_per_split + n, last_tile))

    def x_map(c, n):
        return (jnp.minimum(c * tiles_per_split + n, last_tile), 0)

    if x_buffer_count == 2:
        x_spec = pl.BlockSpec((tn, F), x_map)
    else:  # opt-in deeper pipelining for small-tile configs with VMEM headroom
        x_spec = pl.BlockSpec((tn, F), x_map, pipeline_mode=pl.Buffered(x_buffer_count))

    kernel = functools.partial(_avg_pool_fc_kernel, n_nodes=N, mask_tail=mask_tail)

    y_part, cnt_part = pl.pallas_call(
        kernel,
        out_shape=(
            jax.ShapeDtypeStruct((num_splits, G_pad, C_pad), jnp.float32),  # partial logits
            jax.ShapeDtypeStruct((num_splits, G_pad, 1), jnp.float32),      # partial counts
        ),
        grid_spec=pltpu.PrefetchScalarGridSpec(
            num_scalar_prefetch=0,
            grid=(num_splits, tiles_per_split),
            in_specs=[
                pl.BlockSpec((1, tn), batch_map),                  # batch ids (tiled)
                x_spec,                                            # x tile (streamed)
                pl.BlockSpec((C_pad, F), lambda c, n: (0, 0)),     # weight (resident)
            ],
            out_specs=[
                pl.BlockSpec((None, G_pad, C_pad), lambda c, n: (c, 0, 0)),
                pl.BlockSpec((None, G_pad, 1), lambda c, n: (c, 0, 0)),
            ],
            scratch_shapes=[
                pltpu.VMEM((G_pad, F), jnp.float32),               # pooled feature sums
                pltpu.VMEM((G_pad, 1), jnp.float32),               # per-graph node counts
            ],
        ),
        compiler_params=pltpu.CompilerParams(
            dimension_semantics=("parallel", "arbitrary"),         # splits x node-reduction
            vmem_limit_bytes=vmem_limit_bytes,
        ),
    )(batch_p, x, w_p)

    # Tiny cross-split combine + mean + bias (O(G*C) work) in plain JAX.
    sums_y = jnp.sum(y_part, axis=0)[:num_graphs, :C]              # (G, C) summed logits
    counts = jnp.sum(cnt_part, axis=0)[:num_graphs]                # (G, 1)
    return sums_y / jnp.maximum(counts, 1.0) + bias[None, :].astype(jnp.float32)


if __name__ == "__main__":
    key = jax.random.PRNGKey(0)
    k_x, k_b, k_w, k_bias = jax.random.split(key, 4)

    # Small synthetic graph batch (in_features scaled down from the real 16928).
    num_nodes = 200          # not a multiple of the 128-node tile -> exercises the tail mask
    in_features = 256
    num_graphs = 4
    num_classes = 10

    x = jax.random.normal(k_x, (num_nodes, in_features), dtype=jnp.float32)
    # deterministic graph assignment covering all graphs, sorted like torch_geometric batches
    batch = jnp.sort(jax.random.randint(k_b, (num_nodes,), 0, num_graphs, dtype=jnp.int32))
    batch = batch.at[:num_graphs].set(jnp.arange(num_graphs, dtype=jnp.int32))
    batch = jnp.sort(batch)

    # nn.Linear(in_features, 10): weight [10, F] (torch-native layout), bias [10]
    bound = 1.0 / math.sqrt(in_features)
    weight = jax.random.uniform(k_w, (num_classes, in_features),
                                minval=-bound, maxval=bound, dtype=jnp.float32)
    bias = jax.random.uniform(k_bias, (num_classes,),
                              minval=-bound, maxval=bound, dtype=jnp.float32)

    out = avg_pool_fc(x, batch, weight, bias, num_graphs)
    out = jax.block_until_ready(out)
    assert out.shape == (num_graphs, num_classes)

    # Pure-JAX reference: segment mean pool + linear (all f32 -- the kernel streams f32 now).
    one_hot_ref = (batch[None, :] == jnp.arange(num_graphs)[:, None]).astype(jnp.float32)
    counts_ref = one_hot_ref.sum(axis=1, keepdims=True)
    pooled_ref = (one_hot_ref @ x) / jnp.maximum(counts_ref, 1.0)
    ref = pooled_ref @ weight.T + bias

    assert jnp.allclose(out, ref, atol=1e-2, rtol=1e-2), (out, ref)
    print("KERNEL_OK")
</pallas_src>

<mosaic_0001>
module attributes {stable_mosaic.version = 11 : i64} {
  func.func @_avg_pool_fc_kernel(%arg0: i32, %arg1: i32, %arg2: memref<1x128xi32, #tpu.memory_space<vmem>>, %arg3: memref<128x256xf32, #tpu.memory_space<vmem>>, %arg4: memref<16x256xf32, #tpu.memory_space<vmem>>, %arg5: memref<1x8x16xf32, #tpu.memory_space<vmem>>, %arg6: memref<1x8x1xf32, #tpu.memory_space<vmem>>, %arg7: memref<8x256xf32, #tpu.memory_space<vmem>>, %arg8: memref<8x1xf32, #tpu.memory_space<vmem>>) attributes {dimension_semantics = [#tpu.dimension_semantics<parallel>, #tpu.dimension_semantics<arbitrary>], iteration_bounds = array<i64: 2, 1>, scalar_prefetch = 0 : i64, scratch_operands = 2 : i64, tpu.core_type = #tpu.core_type<tc>, window_params = [{transform_indices = @transform_0, window_bounds = array<i64: 1, 128>}, {transform_indices = @transform_1, window_bounds = array<i64: 128, 256>}, {pipeline_mode = #tpu.pipeline_mode<synchronous>, transform_indices = @transform_2, window_bounds = array<i64: 16, 256>}, {transform_indices = @transform_3, window_bounds = array<i64: 1, 8, 16>}, {transform_indices = @transform_4, window_bounds = array<i64: 1, 8, 1>}]} {
    %c0_i32 = arith.constant 0 : i32
    %0 = arith.cmpi eq, %arg1, %c0_i32 : i32
    %1 = arith.extui %0 : i1 to i32
    %c0_i32_0 = arith.constant 0 : i32
    %2 = arith.cmpi ne, %1, %c0_i32_0 : i32
    scf.if %2 {
      %cst_17 = arith.constant 0.000000e+00 : f32
      %41 = vector.broadcast %cst_17 : f32 to vector<8x256xf32>
      %c0_18 = arith.constant 0 : index
      %c0_19 = arith.constant 0 : index
      %42 = vector.load %arg7[%c0_18, %c0_19] : memref<8x256xf32, #tpu.memory_space<vmem>>, vector<8x256xf32>
      tpu.vector_store %arg7[%c0_18, %c0_19], %41 {strides = array<i32>} : memref<8x256xf32, #tpu.memory_space<vmem>>, vector<8x256xf32>,
      %cst_20 = arith.constant 0.000000e+00 : f32
      %43 = vector.broadcast %cst_20 : f32 to vector<8x1xf32>
      %c0_21 = arith.constant 0 : index
      %c0_22 = arith.constant 0 : index
      %44 = vector.load %arg8[%c0_21, %c0_22] : memref<8x1xf32, #tpu.memory_space<vmem>>, vector<8x1xf32>
      tpu.vector_store %arg8[%c0_21, %c0_22], %43 {strides = array<i32>} : memref<8x1xf32, #tpu.memory_space<vmem>>, vector<8x1xf32>,
    } else {
    }
    %c1_i32 = arith.constant 1 : i32
    %3 = arith.muli %arg0, %c1_i32 : i32
    %4 = arith.addi %3, %arg1 : i32
    %c128_i32 = arith.constant 128 : i32
    %5 = arith.muli %4, %c128_i32 : i32
    %6 = tpu.iota {dimensions = array<i32: 1>} : vector<1x128xi32>
    %7 = vector.broadcast %5 : i32 to vector<1x128xi32>
    %8 = arith.addi %7, %6 : vector<1x128xi32>
    %c200_i32 = arith.constant 200 : i32
    %9 = vector.broadcast %c200_i32 : i32 to vector<1x128xi32>
    %10 = arith.cmpi slt, %8, %9 : vector<1x128xi32>
    %c0 = arith.constant 0 : index
    %c0_1 = arith.constant 0 : index
    %11 = vector.load %arg2[%c0, %c0_1] : memref<1x128xi32, #tpu.memory_space<vmem>>, vector<1x128xi32>
    %c-1_i32 = arith.constant -1 : i32
    %12 = vector.broadcast %c-1_i32 : i32 to vector<1x128xi32>
    %13 = arith.select %10, %11, %12 : vector<1x128xi1>, vector<1x128xi32>
    %14 = tpu.iota {dimensions = array<i32: 0>} : vector<128x1xi32>
    %15 = vector.broadcast %5 : i32 to vector<128x1xi32>
    %16 = arith.addi %15, %14 : vector<128x1xi32>
    %c200_i32_2 = arith.constant 200 : i32
    %17 = vector.broadcast %c200_i32_2 : i32 to vector<128x1xi32>
    %18 = arith.cmpi slt, %16, %17 : vector<128x1xi32>
    %c0_3 = arith.constant 0 : index
    %c0_4 = arith.constant 0 : index
    %19 = vector.load %arg3[%c0_3, %c0_4] : memref<128x256xf32, #tpu.memory_space<vmem>>, vector<128x256xf32>
    %cst = arith.constant 0.000000e+00 : f32
    %20 = vector.shape_cast %18 : vector<128x1xi1> to vector<128x1xi1>
    %21 = vector.broadcast %20 : vector<128x1xi1> to vector<128x256xi1>
    %22 = vector.broadcast %cst : f32 to vector<128x256xf32>
    %23 = arith.select %21, %19, %22 : vector<128x256xi1>, vector<128x256xf32>
    %24 = tpu.iota {dimensions = array<i32: 0>} : vector<8x128xi32>
    %25 = vector.broadcast %13 : vector<1x128xi32> to vector<8x128xi32>
    %26 = arith.cmpi eq, %24, %25 : vector<8x128xi32>
    %27 = arith.extui %26 : vector<8x128xi1> to vector<8x128xi32>
    %28 = arith.sitofp %27 : vector<8x128xi32> to vector<8x128xf32>
    %c0_5 = arith.constant 0 : index
    %c0_6 = arith.constant 0 : index
    %29 = vector.load %arg8[%c0_5, %c0_6] : memref<8x1xf32, #tpu.memory_space<vmem>>, vector<8x1xf32>
    %cst_7 = arith.constant dense<0.000000e+00> : vector<8xf32>
    %30 = vector.multi_reduction <add>, %28, %cst_7 [1] : vector<8x128xf32> to vector<8xf32>
    %31 = vector.shape_cast %30 : vector<8xf32> to vector<8x1xf32>
    %32 = arith.addf %29, %31 : vector<8x1xf32>
    %c0_8 = arith.constant 0 : index
    %c0_9 = arith.constant 0 : index
    %33 = vector.load %arg8[%c0_8, %c0_9] : memref<8x1xf32, #tpu.memory_space<vmem>>, vector<8x1xf32>
    tpu.vector_store %arg8[%c0_8, %c0_9], %32 {strides = array<i32>} : memref<8x1xf32, #tpu.memory_space<vmem>>, vector<8x1xf32>,
    %c0_10 = arith.constant 0 : index
    %c0_11 = arith.constant 0 : index
    %34 = vector.load %arg7[%c0_10, %c0_11] : memref<8x256xf32, #tpu.memory_space<vmem>>, vector<8x256xf32>
    %cst_12 = arith.constant dense<0.000000e+00> : vector<8x256xf32>
    %35 = tpu.matmul %28, %23, %cst_12 {dimension_numbers = #tpu.dot_dimension_numbers<[1], [0], [0], [1], [0, 0, 1, 1], [], []>} : vector<8x128xf32>, vector<128x256xf32>, vector<8x256xf32> -> vector<8x256xf32>
    %36 = arith.addf %34, %35 : vector<8x256xf32>
    %c0_13 = arith.constant 0 : index
    %c0_14 = arith.constant 0 : index
    %37 = vector.load %arg7[%c0_13, %c0_14] : memref<8x256xf32, #tpu.memory_space<vmem>>, vector<8x256xf32>
    tpu.vector_store %arg7[%c0_13, %c0_14], %36 {strides = array<i32>} : memref<8x256xf32, #tpu.memory_space<vmem>>, vector<8x256xf32>,
    %c0_i32_15 = arith.constant 0 : i32
    %38 = arith.cmpi eq, %arg1, %c0_i32_15 : i32
    %39 = arith.extui %38 : i1 to i32
    %c0_i32_16 = arith.constant 0 : i32
    %40 = arith.cmpi ne, %39, %c0_i32_16 : i32
    scf.if %40 {
      %c0_17 = arith.constant 0 : index
      %c0_18 = arith.constant 0 : index
      %41 = vector.load %arg7[%c0_17, %c0_18] : memref<8x256xf32, #tpu.memory_space<vmem>>, vector<8x256xf32>
      %c0_19 = arith.constant 0 : index
      %c0_20 = arith.constant 0 : index
      %42 = vector.load %arg4[%c0_19, %c0_20] : memref<16x256xf32, #tpu.memory_space<vmem>>, vector<16x256xf32>
      %cst_21 = arith.constant dense<0.000000e+00> : vector<8x16xf32>
      %43 = tpu.matmul %41, %42, %cst_21 {dimension_numbers = #tpu.dot_dimension_numbers<[1], [1], [0], [0], [0, 0, 1, 0], [], []>} : vector<8x256xf32>, vector<16x256xf32>, vector<8x16xf32> -> vector<8x16xf32>
      %c0_22 = arith.constant 0 : index
      %c0_23 = arith.constant 0 : index
      %c0_24 = arith.constant 0 : index
      %44 = vector.load %arg5[%c0_22, %c0_23, %c0_24] : memref<1x8x16xf32, #tpu.memory_space<vmem>>, vector<1x8x16xf32>
      %45 = vector.shape_cast %44 : vector<1x8x16xf32> to vector<8x16xf32>
      %46 = vector.shape_cast %43 : vector<8x16xf32> to vector<1x8x16xf32>
      tpu.vector_store %arg5[%c0_22, %c0_23, %c0_24], %46 {strides = array<i32>} : memref<1x8x16xf32, #tpu.memory_space<vmem>>, vector<1x8x16xf32>,
      %c0_25 = arith.constant 0 : index
      %c0_26 = arith.constant 0 : index
      %47 = vector.load %arg8[%c0_25, %c0_26] : memref<8x1xf32, #tpu.memory_space<vmem>>, vector<8x1xf32>
      %c0_27 = arith.constant 0 : index
      %c0_28 = arith.constant 0 : index
      %c0_29 = arith.constant 0 : index
      %48 = vector.load %arg6[%c0_27, %c0_28, %c0_29] : memref<1x8x1xf32, #tpu.memory_space<vmem>>, vector<1x8x1xf32>
      %49 = vector.shape_cast %48 : vector<1x8x1xf32> to vector<8x1xf32>
      %50 = vector.shape_cast %47 : vector<8x1xf32> to vector<1x8x1xf32>
      tpu.vector_store %arg6[%c0_27, %c0_28, %c0_29], %50 {strides = array<i32>} : memref<1x8x1xf32, #tpu.memory_space<vmem>>, vector<1x8x1xf32>,
    } else {
    }
    return
  }
  func.func @transform_0(%arg0: i32, %arg1: i32) -> (i32, i32) {
    %c1_i32 = arith.constant 1 : i32
    %0 = arith.muli %arg0, %c1_i32 : i32
    %1 = arith.addi %0, %arg1 : i32
    %c1_i32_0 = arith.constant 1 : i32
    %2 = arith.minsi %1, %c1_i32_0 : i32
    %c0_i32 = arith.constant 0 : i32
    %c0_i32_1 = arith.constant 0 : i32
    return %c0_i32, %2 : i32, i32
  }
  func.func @transform_1(%arg0: i32, %arg1: i32) -> (i32, i32) {
    %c1_i32 = arith.constant 1 : i32
    %0 = arith.muli %arg0, %c1_i32 : i32
    %1 = arith.addi %0, %arg1 : i32
    %c1_i32_0 = arith.constant 1 : i32
    %2 = arith.minsi %1, %c1_i32_0 : i32
    %c0_i32 = arith.constant 0 : i32
    %c0_i32_1 = arith.constant 0 : i32
    return %2, %c0_i32 : i32, i32
  }
  func.func @transform_2(%arg0: i32, %arg1: i32) -> (i32, i32) {
    %c0_i32 = arith.constant 0 : i32
    %c0_i32_0 = arith.constant 0 : i32
    %c0_i32_1 = arith.constant 0 : i32
    return %c0_i32, %c0_i32_0 : i32, i32
  }
  func.func @transform_3(%arg0: i32, %arg1: i32) -> (i32, i32, i32) {
    %c0_i32 = arith.constant 0 : i32
    %c0_i32_0 = arith.constant 0 : i32
    %c0_i32_1 = arith.constant 0 : i32
    return %arg0, %c0_i32, %c0_i32_0 : i32, i32, i32
  }
  func.func @transform_4(%arg0: i32, %arg1: i32) -> (i32, i32, i32) {
    %c0_i32 = arith.constant 0 : i32
    %c0_i32_0 = arith.constant 0 : i32
    %c0_i32_1 = arith.constant 0 : i32
    return %arg0, %c0_i32, %c0_i32_0 : i32, i32, i32
  }
}

</mosaic_0001>

<llo_original>
// kernel: tpu_custom_call.1
$region0: #{tpu_custom_call.1}
  #allocation0 [shape = 'u32[]', space=smem, size = 0x4, offset = 0x4, fixed_abs, tag = 'smem constant byte address 0x4 - core index']
  #allocation1 [shape = 'u32[144,128]{1,0:T(1,128)}', space=vmem, size = 0x12000, scoped, tag = 'internal scratch']
  #allocation2 [shape = 'f32[8,256]{1,0:T(8,128)}', space=vmem, size = 0x2000, scoped, tag = 'scratch operand']
  #allocation3 [shape = 'f32[8,1]{1,0:T(8,128)}', space=vmem, size = 0x1000, scoped, tag = 'scratch operand']
  %s0 = inlined_call_operand.hbm [shape: s32[1,256], index: 0, kind: input, shape index: {}]
  %s1 = inlined_call_operand.hbm [shape: f32[200,256], index: 1, kind: input, shape index: {}]
  %s2 = inlined_call_operand.hbm [shape: f32[16,256], index: 2, kind: input, shape index: {}]
  %s3 = inlined_call_operand.hbm [shape: f32[2,8,16], index: 3, kind: output, shape index: {0}]
  %s4 = inlined_call_operand.vmem [shape: f32[2,8,1], index: 4, kind: output, shape index: {1}]
  %5 = xla_tuple %s3, %s4
  %s6 = sld [smem:[#allocation0]]
  $region73: #{tpu_custom_call.1} parent=0
    _
  %s8 = ssub.s32 1, %s6
  %s9 = scalar_select 0, %s8, %s6
  $region1: #{tpu_custom_call.1} parent=0
    #allocation4 [shape = 'u8[1024]{0}', space=vmem, size = 0x400, scoped, tag = 'input window, operand 0']
    #allocation5 [shape = 's32[2]{0}', space=sflag, size = 0x8, scoped, tag = 'scoped memory for tpu_custom_call.1']
    #allocation6 [shape = 's32[2]{0}', space=sflag, size = 0x8, scoped, tag = 'scoped memory for tpu_custom_call.1']
    #allocation7 [shape = 'u8[262144]{0}', space=vmem, size = 0x40000, scoped, tag = 'input window, operand 1']
    #allocation8 [shape = 's32[2]{0}', space=sflag, size = 0x8, scoped, tag = 'scoped memory for tpu_custom_call.1']
    #allocation9 [shape = 'u8[16384]{0}', space=vmem, size = 0x4000, scoped, tag = 'input window, operand 2, single buffered']
    #allocation10 [shape = 'u8[8192]{0}', space=vmem, size = 0x2000, scoped, tag = 'output window, operand 0']
    %10 = vsyncpa [#allocation5], 0
    %s11 = scalar_lea.sflag [#allocation5], 1
    %12 = vsyncpa %s11, 0
    %13 = vsyncpa [#allocation8], 0
    %s14 = scalar_lea.sflag [#allocation8], 1
    %15 = vsyncpa %s14, 0
    %16 = vsyncpa [#allocation6], 0
    %s17 = scalar_lea.sflag [#allocation6], 1
    %18 = vsyncpa %s17, 0
    loop: start=0, step=1, limit=4
    $region2: #{tpu_custom_call.1} parent=1 // loop_pre_header
      _
    $region3: #{tpu_custom_call.1} parent=1 // loop_header
      %s20 = sphi 0, %s24
      %p21 = scmp.ge.s32.totalorder %s20, 4
      %s27 = sphi 0, %s39
      %s28 = sphi 0, %s35
      %s29 = sphi 0, %s27
      %s30 = sphi 0, %s28
      %s31 = sphi 0, %s29
      %s32 = sphi 0, %s30
      %s48 = sphi 0, %s50
      %s51 = sphi 0, %s48
      %s52 = sphi 0, %s51
      %s68 = sphi 0, %s52
      %s80 = sphi 0, %s82
      %s83 = sphi 0, %s80
      %s84 = sphi 0, %s83
      %s100 = sphi 0, %s84
      %s104 = sphi 0, %s104
      %s106 = sphi 0, %s104
      %s107 = sphi 0, %s106
      %s121 = sphi 0, %s107
      %s127 = sphi 0, %s129
      %s130 = sphi 0, %s127
      %s131 = sphi 0, %s130
      %s147 = sphi 0, %s131
      %s153 = sphi 0, %s155
      %s156 = sphi 0, %s153
      %s157 = sphi 0, %s156
      %s173 = sphi 0, %s157
    $region4: #{tpu_custom_call.1} parent=1 // loop_header_branch
      %23 = sbr.rel (%p21) target = $region8
    $region5: #{tpu_custom_call.1} parent=1 // loop_body
      %s25 = ssub.s32 %s20, 1
      %s26 = ssub.s32 %s20, 2
      %s33 = sadd.s32 1, %s28
      %p34 = scmp.ge.s32.totalorder %s33, 1
      %s35 = scalar_select %p34, 0, %s33
      %s36 = sadd.s32 1, %s27
      %s37 = scalar_select %p34, %s36, %s27
      %p38 = scmp.ge.s32.totalorder %s37, 2
      %s39 = scalar_select %p38, 0, %s37
      %s40 = sadd.s32 %s27, %s28
      %p41 = scmp.lt.s32.totalorder %s40, 1
      %s42 = scalar_select %p41, %s40, 1
      %s43 = sadd.s32 %s39, %s35
      %p44 = scmp.lt.s32.totalorder %s43, 1
      %s45 = scalar_select %p44, %s43, 1
      %s46 = ssub.s32 %s42, %s45
      %p47 = scmp.eq.s32.totalorder %s46, 0
      %s49 = sadd.s32 %s48, 1
      %s50 = scalar_select %p47, %s48, %s49
      %p53 = pneg %p47
      %p54 = scmp.eq.s32.totalorder %s20, 1
      %p55 = por %p53, %p54
      %p56 = scmp.ne.s32.totalorder %s48, %s51
      %p57 = scmp.eq.s32.totalorder %s20, 0
      %p58 = por %p56, %p57
      %p59 = scmp.ne.s32.totalorder %s48, %s51
      %p60 = scmp.eq.s32.totalorder %s25, 1
      %p61 = por %p59, %p60
      %p62 = scmp.ne.s32.totalorder %s51, %s52
      %p63 = scmp.eq.s32.totalorder %s25, 0
      %p64 = por %p62, %p63
      %p65 = scmp.ne.s32.totalorder %s51, %s52
      %p66 = scmp.eq.s32.totalorder %s26, 1
      %p67 = por %p65, %p66
      %p69 = scmp.ne.s32.totalorder %s52, %s68
      %p70 = scmp.eq.s32.totalorder %s26, 0
      %p71 = por %p69, %p70
      %s72 = sadd.s32 %s27, %s28
      %p73 = scmp.lt.s32.totalorder %s72, 1
      %s74 = scalar_select %p73, %s72, 1
      %s75 = sadd.s32 %s39, %s35
      %p76 = scmp.lt.s32.totalorder %s75, 1
      %s77 = scalar_select %p76, %s75, 1
      %s78 = ssub.s32 %s74, %s77
      %p79 = scmp.eq.s32.totalorder %s78, 0
      %s81 = sadd.s32 %s80, 1
      %s82 = scalar_select %p79, %s80, %s81
      %p85 = pneg %p79
      %p86 = scmp.eq.s32.totalorder %s20, 1
      %p87 = por %p85, %p86
      %p88 = scmp.ne.s32.totalorder %s80, %s83
      %p89 = scmp.eq.s32.totalorder %s20, 0
      %p90 = por %p88, %p89
      %p91 = scmp.ne.s32.totalorder %s80, %s83
      %p92 = scmp.eq.s32.totalorder %s25, 1
      %p93 = por %p91, %p92
      %p94 = scmp.ne.s32.totalorder %s83, %s84
      %p95 = scmp.eq.s32.totalorder %s25, 0
      %p96 = por %p94, %p95
      %p97 = scmp.ne.s32.totalorder %s83, %s84
      %p98 = scmp.eq.s32.totalorder %s26, 1
      %p99 = por %p97, %p98
      %p101 = scmp.ne.s32.totalorder %s84, %s100
      %p102 = scmp.eq.s32.totalorder %s26, 0
      %p103 = por %p101, %p102
      %s105 = sadd.s32 %s104, 1
      %p108 = scmp.eq.s32.totalorder %s20, 1
      %p109 = scmp.ne.s32.totalorder %s104, %s106
      %p110 = scmp.eq.s32.totalorder %s20, 0
      %p111 = por %p109, %p110
      %p112 = scmp.ne.s32.totalorder %s104, %s106
      %p113 = scmp.eq.s32.totalorder %s25, 1
      %p114 = por %p112, %p113
      %p115 = scmp.ne.s32.totalorder %s106, %s107
      %p116 = scmp.eq.s32.totalorder %s25, 0
      %p117 = por %p115, %p116
      %p118 = scmp.ne.s32.totalorder %s106, %s107
      %p119 = scmp.eq.s32.totalorder %s26, 1
      %p120 = por %p118, %p119
      %p122 = scmp.ne.s32.totalorder %s107, %s121
      %p123 = scmp.eq.s32.totalorder %s26, 0
      %p124 = por %p122, %p123
      %s125 = ssub.s32 %s27, %s39
      %p126 = scmp.eq.s32.totalorder %s125, 0
      %s128 = sadd.s32 %s127, 1
      %s129 = scalar_select %p126, %s127, %s128
      %p132 = pneg %p126
      %p133 = scmp.eq.s32.totalorder %s20, 1
      %p134 = por %p132, %p133
      %p135 = scmp.ne.s32.totalorder %s127, %s130
      %p136 = scmp.eq.s32.totalorder %s20, 0
      %p137 = por %p135, %p136
      %p138 = scmp.ne.s32.totalorder %s127, %s130
      %p139 = scmp.eq.s32.totalorder %s25, 1
      %p140 = por %p138, %p139
      %p141 = scmp.ne.s32.totalorder %s130, %s131
      %p142 = scmp.eq.s32.totalorder %s25, 0
      %p143 = por %p141, %p142
      %p144 = scmp.ne.s32.totalorder %s130, %s131
      %p145 = scmp.eq.s32.totalorder %s26, 1
      %p146 = por %p144, %p145
      %p148 = scmp.ne.s32.totalorder %s131, %s147
      %p149 = scmp.eq.s32.totalorder %s26, 0
      %p150 = por %p148, %p149
      %s151 = ssub.s32 %s27, %s39
      %p152 = scmp.eq.s32.totalorder %s151, 0
      %s154 = sadd.s32 %s153, 1
      %s155 = scalar_select %p152, %s153, %s154
      %p158 = pneg %p152
      %p159 = scmp.eq.s32.totalorder %s20, 1
      %p160 = por %p158, %p159
      %p161 = scmp.ne.s32.totalorder %s153, %s156
      %p162 = scmp.eq.s32.totalorder %s20, 0
      %p163 = por %p161, %p162
      %p164 = scmp.ne.s32.totalorder %s153, %s156
      %p165 = scmp.eq.s32.totalorder %s25, 1
      %p166 = por %p164, %p165
      %p167 = scmp.ne.s32.totalorder %s156, %s157
      %p168 = scmp.eq.s32.totalorder %s25, 0
      %p169 = por %p167, %p168
      %p170 = scmp.ne.s32.totalorder %s156, %s157
      %p171 = scmp.eq.s32.totalorder %s26, 1
      %p172 = por %p170, %p171
      %p174 = scmp.ne.s32.totalorder %s157, %s173
      %p175 = scmp.eq.s32.totalorder %s26, 0
      %p176 = por %p174, %p175
      %p177 = scmp.le.s32.totalorder 1, %s20
      %p178 = scmp.lt.s32.totalorder %s20, 3
      %p179 = pnand %p177, %p178
      %p180 = pneg %p179
      // Predicated region
      $region9: #{tpu_custom_call.1} parent=5 // pred_check
        _
      $region10: #{tpu_custom_call.1} parent=5 // pred_check_branch
        %182 = sbr.rel (%p179) target = $region12
      $region11: #{tpu_custom_call.1} parent=5 // pred_region
        %s183 = ssub.s32 %s20, 1
        // Predicated region
        $region13: #{tpu_custom_call.1} parent=11 // pred_check
          %p184 = pneg %p117
        $region14: #{tpu_custom_call.1} parent=11 // pred_check_branch
          %186 = sbr.rel (%p184) target = $region16
        $region15: #{tpu_custom_call.1} parent=11 // pred_region
          %s188 = ssub.s32 512, 512
          %189 = vsyncadd [#allocation8], %s188
          %s190 = sshll.u32 [#allocation9], 4
          %s191 = int_to_ptr.vmem [resolvable:$true] %s190
          %196 = dma.hbm_to_vmem [thread:$0]  %s2, 512, %s191, [#allocation8], 256, 256, 16
        $region16: #{tpu_custom_call.1} parent=11 // pred_fallthru
          _
      $region12: #{tpu_custom_call.1} parent=5 // pred_fallthru
        _
      %p197 = scmp.lt.s32.totalorder %s20, 2
      // Predicated region
      $region17: #{tpu_custom_call.1} parent=5 // pred_check
        %p198 = pneg %p197
      $region18: #{tpu_custom_call.1} parent=5 // pred_check_branch
        %200 = sbr.rel (%p198) target = $region20
      $region19: #{tpu_custom_call.1} parent=5 // pred_region
        // Predicated region
        $region21: #{tpu_custom_call.1} parent=19 // pred_check
          %p201 = pneg %p58
        $region22: #{tpu_custom_call.1} parent=19 // pred_check_branch
          %203 = sbr.rel (%p201) target = $region24
        $region23: #{tpu_custom_call.1} parent=19 // pred_region
          %s204 = sand.u32 %s48, 1
          %s205 = scalar_lea.sflag [#allocation5], %s204
          %s206 = sand.u32 %s48, 1
          %s207 = scalar_lea.vmem [#allocation4], %s206
          %s208 = sadd.s32 %s27, %s28
          %p209 = scmp.lt.s32.totalorder %s208, 1
          %s210 = scalar_select %p209, %s208, 1
          %s212 = ssub.s32 16, 16
          %213 = vsyncadd %s205, %s212
          %s214 = smul.addr %s210, 16
          %s215 = scalar_lea.hbm %s0, %s214
          %s217 = sshll.u32 %s207, 4
          %s218 = int_to_ptr.vmem [resolvable:$true] %s217
          %220 = dma.hbm_to_vmem [thread:$0]  %s215, 16, %s218, %s205
        $region24: #{tpu_custom_call.1} parent=19 // pred_fallthru
          _
        // Predicated region
        $region25: #{tpu_custom_call.1} parent=19 // pred_check
          %p221 = pneg %p90
        $region26: #{tpu_custom_call.1} parent=19 // pred_check_branch
          %223 = sbr.rel (%p221) target = $region28
        $region27: #{tpu_custom_call.1} parent=19 // pred_region
          %s224 = sand.u32 %s20, 1
          %s225 = scalar_lea.sflag [#allocation8], %s224
          %s226 = sand.u32 %s80, 1
          %s227 = smul.addr %s226, 256
          %s228 = scalar_lea.vmem [#allocation7], %s227
          %s229 = sadd.s32 %s27, %s28
          %p230 = scmp.lt.s32.totalorder %s229, 1
          %s231 = scalar_select %p230, %s229, 1
          %s232 = smul.u32 16, %s231
          %s233 = ssub.s32 25, %s232
          %p234 = scmp.lt.s32.totalorder %s233, 16
          %s235 = scalar_select %p234, %s233, 16
          %s236 = smul.u32 128, %s235
          %s237 = smul.u32 %s236, 2
          %s239 = ssub.s32 4096, %s237
          %240 = vsyncadd %s225, %s239
          %p241 = scmp.ne.s32.totalorder 0, %s237
          %s242 = smul.addr %s232, 2
          %s243 = smul.addr %s242, 128
          %s244 = scalar_lea.hbm %s1, %s243
          %s245 = smul.u32 16, %s235
          %s246 = sshll.u32 %s228, 4
          %s247 = int_to_ptr.vmem [resolvable:$true] %s246
          %s248 = sshll.u32 %s245, 4
          %252 = dma.hbm_to_vmem [thread:$0]  (%p241), %s244, %s248, %s247, %s225, 256, 256, 16
        $region28: #{tpu_custom_call.1} parent=19 // pred_fallthru
          _
      $region20: #{tpu_custom_call.1} parent=5 // pred_fallthru
        _
      %p253 = scmp.le.s32.totalorder 1, %s20
      %p254 = scmp.lt.s32.totalorder %s20, 3
      %p255 = pnand %p253, %p254
      %p256 = pneg %p255
      // Predicated region
      $region29: #{tpu_custom_call.1} parent=5 // pred_check
        _
      $region30: #{tpu_custom_call.1} parent=5 // pred_check_branch
        %258 = sbr.rel (%p255) target = $region32
      $region31: #{tpu_custom_call.1} parent=5 // pred_region
        %s259 = ssub.s32 %s20, 1
        %s260 = sand.u32 %s51, 1
        %s261 = scalar_lea.sflag [#allocation5], %s260
        %s262 = sand.u32 %s51, 1
        %s263 = scalar_lea.vmem [#allocation4], %s262
        // Predicated region
        $region33: #{tpu_custom_call.1} parent=31 // pred_check
          %p264 = pneg %p64
        $region34: #{tpu_custom_call.1} parent=31 // pred_check_branch
          %266 = sbr.rel (%p264) target = $region36
        $region35: #{tpu_custom_call.1} parent=31 // pred_region
          %267 = dma.done %s261, 16
        $region36: #{tpu_custom_call.1} parent=31 // pred_fallthru
          _
        %s268 = sand.u32 %s25, 1
        %s269 = scalar_lea.sflag [#allocation8], %s268
        %s270 = sand.u32 %s83, 1
        %s271 = smul.addr %s270, 256
        %s272 = scalar_lea.vmem [#allocation7], %s271
        // Predicated region
        $region37: #{tpu_custom_call.1} parent=31 // pred_check
          %p273 = pneg %p96
        $region38: #{tpu_custom_call.1} parent=31 // pred_check_branch
          %275 = sbr.rel (%p273) target = $region40
        $region39: #{tpu_custom_call.1} parent=31 // pred_region
          %276 = dma.done %s269, 4096
        $region40: #{tpu_custom_call.1} parent=31 // pred_fallthru
          _
        // Predicated region
        $region41: #{tpu_custom_call.1} parent=31 // pred_check
          %p277 = pneg %p117
        $region42: #{tpu_custom_call.1} parent=31 // pred_check_branch
          %279 = sbr.rel (%p277) target = $region44
        $region43: #{tpu_custom_call.1} parent=31 // pred_region
          %280 = dma.done [#allocation8], 512
        $region44: #{tpu_custom_call.1} parent=31 // pred_fallthru
          _
        %s281 = sand.u32 %s51, 1
        %s282 = scalar_lea.sflag [#allocation5], %s281
        %s283 = sand.u32 %s51, 1
        %s284 = scalar_lea.vmem [#allocation4], %s283
        %p285 = pneg %p64
        %p286 = pneg %p61
        %s287 = sand.u32 %s25, 1
        %s288 = scalar_lea.sflag [#allocation8], %s287
        %s289 = sand.u32 %s83, 1
        %s290 = smul.addr %s289, 256
        %s291 = scalar_lea.vmem [#allocation7], %s290
        %p292 = pneg %p96
        %p293 = pneg %p93
        %p294 = pneg %p117
        %p295 = pneg %p114
        %p296 = pneg %p143
        %p297 = pneg %p140
        %s298 = sand.u32 %s130, 1
        %s299 = scalar_lea.sflag [#allocation6], %s298
        %s300 = sand.u32 %s130, 1
        %s301 = smul.addr %s300, 8
        %s302 = scalar_lea.vmem [#allocation10], %s301
        %p303 = pneg %p169
        %p304 = pneg %p166
        %p305 = scmp.lt.s32.totalorder %s29, 1
        %s306 = scalar_select %p305, %s29, 1
        %s307 = smul.addr %s306, 8
        %s308 = scalar_lea.vmem %s4, %s307
        %s309 = sadd.s32 %s29, %s30
        %p310 = scmp.lt.s32.totalorder %s309, 1
        %s311 = scalar_select %p310, %s309, 1
        %s312 = sadd.s32 %s29, %s30
        %p313 = scmp.lt.s32.totalorder %s312, 1
        %s314 = scalar_select %p313, %s312, 1
        %s315 = smul.u32 16, %s314
        %s316 = ssub.s32 25, %s315
        %p317 = scmp.lt.s32.totalorder %s316, 16
        %s318 = scalar_select %p317, %s316, 16
        %s319 = smul.u32 128, %s318
        %s320 = smul.u32 %s319, 2
        %p321 = scmp.lt.s32.totalorder %s29, 1
        %s322 = scalar_select %p321, %s29, 1
        %s323 = smul.addr %s322, 8
        %s324 = scalar_lea.vmem %s4, %s323
        %p325 = scmp.eq.s32.totalorder %s30, 0
        // Predicated region
        $region45: #{tpu_custom_call.1} parent=31 // pred_check
          %p326 = pneg %p325
        $region46: #{tpu_custom_call.1} parent=31 // pred_check_branch
          %328 = sbr.rel (%p326) target = $region48
        $region47: #{tpu_custom_call.1} parent=31 // pred_region
          %329 = vst [vmem:[#allocation2] sm:$0xff] 0.0
          %330 = vst [vmem:[#allocation2 + $0x8] sm:$0xff] 0.0
          %vm331 = vcmask 7168
          %332 = vst.msk [vmem:[#allocation3] sm:$0xff] %vm331, 0.0
        $region48: #{tpu_custom_call.1} parent=31 // pred_fallthru
          _
        %s333 = sadd.s32 %s29, %s30
        %s334 = smul.u32 %s333, 128
        %v335 = vlaneseq
        %v336 = vand.u32 %v335, 127
        %v337 = vstv %s334
        %v338 = vadd.s32 %v337, %v336
        %vm339 = vcmp.lt.s32.totalorder %v338, 200
        %v340 = vld [vmem:[%s263] sm:$0x1]
        %v341 = vsel %vm339, %v340, 4294967295
        %v342 = vlaneseq
        %v343 = vshrl.u32 %v342, 7
        %v344 = vadd.s32 %v343, 8
        %v345 = vadd.s32 %v343, 16
        %v346 = vadd.s32 %v343, 24
        %v347 = vadd.s32 %v343, 32
        %v348 = vadd.s32 %v343, 40
        %v349 = vadd.s32 %v343, 48
        %v350 = vadd.s32 %v343, 56
        %v351 = vadd.s32 %v343, 64
        %v352 = vadd.s32 %v343, 72
        %v353 = vadd.s32 %v343, 80
        %v354 = vadd.s32 %v343, 88
        %v355 = vadd.s32 %v343, 96
        %v356 = vadd.s32 %v343, 104
        %v357 = vadd.s32 %v343, 112
        %v358 = vadd.s32 %v343, 120
        %v359 = vadd.s32 %v337, %v343
        %v360 = vadd.s32 %v337, %v344
        %v361 = vadd.s32 %v337, %v345
        %v362 = vadd.s32 %v337, %v346
        %v363 = vadd.s32 %v337, %v347
        %v364 = vadd.s32 %v337, %v348
        %v365 = vadd.s32 %v337, %v349
        %v366 = vadd.s32 %v337, %v350
        %v367 = vadd.s32 %v337, %v351
        %v368 = vadd.s32 %v337, %v352
        %v369 = vadd.s32 %v337, %v353
        %v370 = vadd.s32 %v337, %v354
        %v371 = vadd.s32 %v337, %v355
        %v372 = vadd.s32 %v337, %v356
        %v373 = vadd.s32 %v337, %v357
        %v374 = vadd.s32 %v337, %v358
        %vm375 = vcmp.lt.s32.totalorder %v359, 200
        %vm376 = vcmp.lt.s32.totalorder %v360, 200
        %vm377 = vcmp.lt.s32.totalorder %v361, 200
        %vm378 = vcmp.lt.s32.totalorder %v362, 200
        %vm379 = vcmp.lt.s32.totalorder %v363, 200
        %vm380 = vcmp.lt.s32.totalorder %v364, 200
        %vm381 = vcmp.lt.s32.totalorder %v365, 200
        %vm382 = vcmp.lt.s32.totalorder %v366, 200
        %vm383 = vcmp.lt.s32.totalorder %v367, 200
        %vm384 = vcmp.lt.s32.totalorder %v368, 200
        %vm385 = vcmp.lt.s32.totalorder %v369, 200
        %vm386 = vcmp.lt.s32.totalorder %v370, 200
        %vm387 = vcmp.lt.s32.totalorder %v371, 200
        %vm388 = vcmp.lt.s32.totalorder %v372, 200
        %vm389 = vcmp.lt.s32.totalorder %v373, 200
        %vm390 = vcmp.lt.s32.totalorder %v374, 200
        %v391 = vld [vmem:[%s272] sm:$0xff]
        %v392 = vld [vmem:[%s272 + $0x8] sm:$0xff]
        %v393 = vld [vmem:[%s272 + $0x10] sm:$0xff]
        %v394 = vld [vmem:[%s272 + $0x18] sm:$0xff]
        %v395 = vld [vmem:[%s272 + $0x20] sm:$0xff]
        %v396 = vld [vmem:[%s272 + $0x28] sm:$0xff]
        %v397 = vld [vmem:[%s272 + $0x30] sm:$0xff]
        %v398 = vld [vmem:[%s272 + $0x38] sm:$0xff]
        %v399 = vld [vmem:[%s272 + $0x40] sm:$0xff]
        %v400 = vld [vmem:[%s272 + $0x48] sm:$0xff]
        %v401 = vld [vmem:[%s272 + $0x50] sm:$0xff]
        %v402 = vld [vmem:[%s272 + $0x58] sm:$0xff]
        %v403 = vld [vmem:[%s272 + $0x60] sm:$0xff]
        %v404 = vld [vmem:[%s272 + $0x68] sm:$0xff]
        %v405 = vld [vmem:[%s272 + $0x70] sm:$0xff]
        %v406 = vld [vmem:[%s272 + $0x78] sm:$0xff]
        %v407 = vld [vmem:[%s272 + $0x80] sm:$0xff]
        %v408 = vld [vmem:[%s272 + $0x88] sm:$0xff]
        %v409 = vld [vmem:[%s272 + $0x90] sm:$0xff]
        %v410 = vld [vmem:[%s272 + $0x98] sm:$0xff]
        %v411 = vld [vmem:[%s272 + $0xa0] sm:$0xff]
        %v412 = vld [vmem:[%s272 + $0xa8] sm:$0xff]
        %v413 = vld [vmem:[%s272 + $0xb0] sm:$0xff]
        %v414 = vld [vmem:[%s272 + $0xb8] sm:$0xff]
        %v415 = vld [vmem:[%s272 + $0xc0] sm:$0xff]
        %v416 = vld [vmem:[%s272 + $0xc8] sm:$0xff]
        %v417 = vld [vmem:[%s272 + $0xd0] sm:$0xff]
        %v418 = vld [vmem:[%s272 + $0xd8] sm:$0xff]
        %v419 = vld [vmem:[%s272 + $0xe0] sm:$0xff]
        %v420 = vld [vmem:[%s272 + $0xe8] sm:$0xff]
        %v421 = vld [vmem:[%s272 + $0xf0] sm:$0xff]
        %v422 = vld [vmem:[%s272 + $0xf8] sm:$0xff]
        %v423 = vsel %vm375, 1, 0
        %v424 = vsel %vm376, 1, 0
        %v425 = vsel %vm377, 1, 0
        %v426 = vsel %vm378, 1, 0
        %v427 = vsel %vm379, 1, 0
        %v428 = vsel %vm380, 1, 0
        %v429 = vsel %vm381, 1, 0
        %v430 = vsel %vm382, 1, 0
        %v431 = vsel %vm383, 1, 0
        %v432 = vsel %vm384, 1, 0
        %v433 = vsel %vm385, 1, 0
        %v434 = vsel %vm386, 1, 0
        %v435 = vsel %vm387, 1, 0
        %v436 = vsel %vm388, 1, 0
        %v437 = vsel %vm389, 1, 0
        %v438 = vsel %vm390, 1, 0
        %vm439 = vcmp.eq.s32.totalorder %v423, 1
        %vm440 = vcmp.eq.s32.totalorder %v424, 1
        %vm441 = vcmp.eq.s32.totalorder %v425, 1
        %vm442 = vcmp.eq.s32.totalorder %v426, 1
        %vm443 = vcmp.eq.s32.totalorder %v427, 1
        %vm444 = vcmp.eq.s32.totalorder %v428, 1
        %vm445 = vcmp.eq.s32.totalorder %v429, 1
        %vm446 = vcmp.eq.s32.totalorder %v430, 1
        %vm447 = vcmp.eq.s32.totalorder %v431, 1
        %vm448 = vcmp.eq.s32.totalorder %v432, 1
        %vm449 = vcmp.eq.s32.totalorder %v433, 1
        %vm450 = vcmp.eq.s32.totalorder %v434, 1
        %vm451 = vcmp.eq.s32.totalorder %v435, 1
        %vm452 = vcmp.eq.s32.totalorder %v436, 1
        %vm453 = vcmp.eq.s32.totalorder %v437, 1
        %vm454 = vcmp.eq.s32.totalorder %v438, 1
        %v455 = vsel %vm439, %v391, 0.0
        %v456 = vsel %vm439, %v392, 0.0
        %v457 = vsel %vm440, %v393, 0.0
        %v458 = vsel %vm440, %v394, 0.0
        %v459 = vsel %vm441, %v395, 0.0
        %v460 = vsel %vm441, %v396, 0.0
        %v461 = vsel %vm442, %v397, 0.0
        %v462 = vsel %vm442, %v398, 0.0
        %v463 = vsel %vm443, %v399, 0.0
        %v464 = vsel %vm443, %v400, 0.0
        %v465 = vsel %vm444, %v401, 0.0
        %v466 = vsel %vm444, %v402, 0.0
        %v467 = vsel %vm445, %v403, 0.0
        %v468 = vsel %vm445, %v404, 0.0
        %v469 = vsel %vm446, %v405, 0.0
        %v470 = vsel %vm446, %v406, 0.0
        %v471 = vsel %vm447, %v407, 0.0
        %v472 = vsel %vm447, %v408, 0.0
        %v473 = vsel %vm448, %v409, 0.0
        %v474 = vsel %vm448, %v410, 0.0
        %v475 = vsel %vm449, %v411, 0.0
        %v476 = vsel %vm449, %v412, 0.0
        %v477 = vsel %vm450, %v413, 0.0
        %v478 = vsel %vm450, %v414, 0.0
        %v479 = vsel %vm451, %v415, 0.0
        %v480 = vsel %vm451, %v416, 0.0
        %v481 = vsel %vm452, %v417, 0.0
        %v482 = vsel %vm452, %v418, 0.0
        %v483 = vsel %vm453, %v419, 0.0
        %v484 = vsel %vm453, %v420, 0.0
        %v485 = vsel %vm454, %v421, 0.0
        %v486 = vsel %vm454, %v422, 0.0
        %v487 = vlaneseq
        %v488 = vshrl.u32 %v487, 7
        %v489 = vsub.s32 0, %v488
        %v490 = vrot.slane %v341, %v489
        %vm491 = vcmp.eq.s32.totalorder %v343, %v490
        %v492 = vsel %vm491, 1, 0
        %v493 = vcvt.s32.f32 %v492
        %v494 = vld [vmem:[#allocation3] sm:$0xff]
        %495 = vadd.xlane.f32.xlu0 %v493
        %v496 = vpop.xlane.xlu0 %495
        %v497 = vadd.f32 %v494, %v496
        %vm498 = vcmask 7168
        %499 = vst.msk [vmem:[#allocation3] sm:$0xff] %vm498, %v497
        %v500 = vld [vmem:[#allocation2] sm:$0xff]
        %v501 = vld [vmem:[#allocation2 + $0x8] sm:$0xff]
        %502 = vmatprep.subr.mxu0 %v456
        %503 = vmatpush1.msra.mxu0 %v455
        %504 = vmatprep.subr.mxu0 %v458
        %505 = vmatpush1.msra.mxu0 %v457
        %506 = vmatprep.subr.mxu0 %v460
        %507 = vmatpush1.msra.mxu0 %v459
        %508 = vmatprep.subr.mxu0 %v462
        %509 = vmatpush1.msra.mxu0 %v461
        %510 = vmatprep.subr.mxu0 %v464
        %511 = vmatpush1.msra.mxu0 %v463
        %512 = vmatprep.subr.mxu0 %v466
        %513 = vmatpush1.msra.mxu0 %v465
        %514 = vmatprep.subr.mxu0 %v468
        %515 = vmatpush1.msra.mxu0 %v467
        %516 = vmatprep.subr.mxu0 %v470
        %517 = vmatpush1.msra.mxu0 %v469
        %518 = vmatprep.subr.mxu0 %v472
        %519 = vmatpush1.msra.mxu0 %v471
        %520 = vmatprep.subr.mxu0 %v474
        %521 = vmatpush1.msra.mxu0 %v473
        %522 = vmatprep.subr.mxu0 %v476
        %523 = vmatpush1.msra.mxu0 %v475
        %524 = vmatprep.subr.mxu0 %v478
        %525 = vmatpush1.msra.mxu0 %v477
        %526 = vmatprep.subr.mxu0 %v480
        %527 = vmatpush1.msra.mxu0 %v479
        %528 = vmatprep.subr.mxu0 %v482
        %529 = vmatpush1.msra.mxu0 %v481
        %530 = vmatprep.subr.mxu0 %v484
        %531 = vmatpush1.msra.mxu0 %v483
        %532 = vmatprep.subr.mxu0 %v486
        %533 = vmatpush1.msra.mxu0 %v485
        %534 = vmatprep.subr.mxu0 0.0
        %535 = vmatpush1.msra.mxu0 0.0
        %536 = vmatprep.subr.mxu0 0.0
        %537 = vmatpush1.msra.mxu0 0.0
        %538 = vmatprep.subr.mxu0 0.0
        %539 = vmatpush1.msra.mxu0 0.0
        %540 = vmatprep.subr.mxu0 0.0
        %541 = vmatpush1.msra.mxu0 0.0
        %542 = vmatprep.subr.mxu0 0.0
        %543 = vmatpush1.msra.mxu0 0.0
        %544 = vmatprep.subr.mxu0 0.0
        %545 = vmatpush1.msra.mxu0 0.0
        %546 = vmatprep.subr.mxu0 0.0
        %547 = vmatpush1.msra.mxu0 0.0
        %548 = vmatprep.subr.mxu0 0.0
        %549 = vmatpush1.msra.mxu0 0.0
        %550 = vmatprep.subr.mxu0 0.0
        %551 = vmatpush1.msra.mxu0 0.0
        %552 = vmatprep.subr.mxu0 0.0
        %553 = vmatpush1.msra.mxu0 0.0
        %554 = vmatprep.subr.mxu0 0.0
        %555 = vmatpush1.msra.mxu0 0.0
        %556 = vmatprep.subr.mxu0 0.0
        %557 = vmatpush1.msra.mxu0 0.0
        %558 = vmatprep.subr.mxu0 0.0
        %559 = vmatpush1.msra.mxu0 0.0
        %560 = vmatprep.subr.mxu0 0.0
        %561 = vmatpush1.msra.mxu0 0.0
        %562 = vmatprep.subr.mxu0 0.0
        %563 = vmatpush1.msra.mxu0 0.0
        %564 = vmatprep.subr.mxu0 0.0
        %565 = vmatpush1.msra.mxu0 0.0
        %566 = vmatprep.mubr.f32.mxu0 0.0
        %567 = vmatmul.mubr.f32.gmra.mrb[0].mxu0 %v493
        %v568 = vpop.f32.mrb[0].mxu0
        %v569 = vadd.f32 0.0, %v568
        %v570 = vpop.f32.mrb[0].mxu0
        %v571 = vadd.f32 0.0, %v570
        %572 = vdwg.mxu0
        %v573 = vadd.f32 %v500, %v569
        %v574 = vadd.f32 %v501, %v571
        %575 = vst [vmem:[#allocation2] sm:$0xff] %v573
        %576 = vst [vmem:[#allocation2 + $0x8] sm:$0xff] %v574
        // Predicated region
        $region49: #{tpu_custom_call.1} parent=31 // pred_check
          %p577 = pneg %p325
        $region50: #{tpu_custom_call.1} parent=31 // pred_check_branch
          %579 = sbr.rel (%p577) target = $region52
        $region51: #{tpu_custom_call.1} parent=31 // pred_region
          %v580 = vld [vmem:[#allocation2] sm:$0xff]
          %v581 = vld [vmem:[#allocation2 + $0x8] sm:$0xff]
          %v582 = vld [vmem:[#allocation9] sm:$0xff]
          %v583 = vld [vmem:[#allocation9 + $0x8] sm:$0xff]
          %v584 = vld [vmem:[#allocation9 + $0x10] sm:$0xff]
          %v585 = vld [vmem:[#allocation9 + $0x18] sm:$0xff]
          %586 = vmatprep.subr.mxu0 %v583
          %587 = vmatpush1.xpose.msra.mxu0 %v582
          %588 = vmatprep.subr.mxu0 %v585
          %589 = vmatpush1.xpose.msra.mxu0 %v584
          %590 = vmatprep.subr.mxu0 0.0
          %591 = vmatpush1.xpose.msra.mxu0 0.0
          %592 = vmatprep.subr.mxu0 0.0
          %593 = vmatpush1.xpose.msra.mxu0 0.0
          %594 = vmatprep.subr.mxu0 0.0
          %595 = vmatpush1.xpose.msra.mxu0 0.0
          %596 = vmatprep.subr.mxu0 0.0
          %597 = vmatpush1.xpose.msra.mxu0 0.0
          %598 = vmatprep.subr.mxu0 0.0
          %599 = vmatpush1.xpose.msra.mxu0 0.0
          %600 = vmatprep.subr.mxu0 0.0
          %601 = vmatpush1.xpose.msra.mxu0 0.0
          %602 = vmatprep.subr.mxu0 0.0
          %603 = vmatpush1.xpose.msra.mxu0 0.0
          %604 = vmatprep.subr.mxu0 0.0
          %605 = vmatpush1.xpose.msra.mxu0 0.0
          %606 = vmatprep.subr.mxu0 0.0
          %607 = vmatpush1.xpose.msra.mxu0 0.0
          %608 = vmatprep.subr.mxu0 0.0
          %609 = vmatpush1.xpose.msra.mxu0 0.0
          %610 = vmatprep.subr.mxu0 0.0
          %611 = vmatpush1.xpose.msra.mxu0 0.0
          %612 = vmatprep.subr.mxu0 0.0
          %613 = vmatpush1.xpose.msra.mxu0 0.0
          %614 = vmatprep.subr.mxu0 0.0
          %615 = vmatpush1.xpose.msra.mxu0 0.0
          %616 = vmatprep.subr.mxu0 0.0
          %617 = vmatpush1.xpose.msra.mxu0 0.0
          %618 = vmatprep.subr.mxu0 0.0
          %619 = vmatpush1.xpose.msra.mxu0 0.0
          %620 = vmatprep.subr.mxu0 0.0
          %621 = vmatpush1.xpose.msra.mxu0 0.0
          %622 = vmatprep.subr.mxu0 0.0
          %623 = vmatpush1.xpose.msra.mxu0 0.0
          %624 = vmatprep.subr.mxu0 0.0
          %625 = vmatpush1.xpose.msra.mxu0 0.0
          %626 = vmatprep.subr.mxu0 0.0
          %627 = vmatpush1.xpose.msra.mxu0 0.0
          %628 = vmatprep.subr.mxu0 0.0
          %629 = vmatpush1.xpose.msra.mxu0 0.0
          %630 = vmatprep.subr.mxu0 0.0
          %631 = vmatpush1.xpose.msra.mxu0 0.0
          %632 = vmatprep.subr.mxu0 0.0
          %633 = vmatpush1.xpose.msra.mxu0 0.0
          %634 = vmatprep.subr.mxu0 0.0
          %635 = vmatpush1.xpose.msra.mxu0 0.0
          %636 = vmatprep.subr.mxu0 0.0
          %637 = vmatpush1.xpose.msra.mxu0 0.0
          %638 = vmatprep.subr.mxu0 0.0
          %639 = vmatpush1.xpose.msra.mxu0 0.0
          %640 = vmatprep.subr.mxu0 0.0
          %641 = vmatpush1.xpose.msra.mxu0 0.0
          %642 = vmatprep.subr.mxu0 0.0
          %643 = vmatpush1.xpose.msra.mxu0 0.0
          %644 = vmatprep.subr.mxu0 0.0
          %645 = vmatpush1.xpose.msra.mxu0 0.0
          %646 = vmatprep.subr.mxu0 0.0
          %647 = vmatpush1.xpose.msra.mxu0 0.0
          %648 = vmatprep.subr.mxu0 0.0
          %649 = vmatpush1.xpose.msra.mxu0 0.0
          %650 = vmatprep.mubr.f32.mxu0 %v581
          %651 = vmatmul.mubr.f32.gmra.mrb[0].mxu0 %v580
          %v652 = vpop.f32.mrb[0].mxu0
          %v653 = vadd.f32 0.0, %v652
          %v654 = vpop.f32.mrb[0].mxu0
          %655 = vdwg.mxu0
          %vm656 = vcmask 130048
          %657 = vst.msk [vmem:[%s302] sm:$0xff] %vm656, %v653
          %v658 = vld [vmem:[#allocation3] sm:$0xff]
          %659 = vst.msk [vmem:[%s324] sm:$0xff] %vm498, %v658
        $region52: #{tpu_custom_call.1} parent=31 // pred_fallthru
          _
        %s660 = sand.u32 %s130, 1
        %s661 = scalar_lea.sflag [#allocation6], %s660
        %s662 = sand.u32 %s130, 1
        %s663 = smul.addr %s662, 8
        %s664 = scalar_lea.vmem [#allocation10], %s663
        %p665 = scmp.lt.s32.totalorder %s29, 1
        %s666 = scalar_select %p665, %s29, 1
        %s667 = smul.addr %s666, 8
        %s668 = scalar_lea.vmem %s4, %s667
        // Predicated region
        $region53: #{tpu_custom_call.1} parent=31 // pred_check
          %p669 = pneg %p140
        $region54: #{tpu_custom_call.1} parent=31 // pred_check_branch
          %671 = sbr.rel (%p669) target = $region56
        $region55: #{tpu_custom_call.1} parent=31 // pred_region
          %s673 = ssub.s32 128, 128
          %674 = vsyncadd %s661, %s673
          %s675 = smul.addr %s29, 128
          %s676 = scalar_lea.hbm %s3, %s675
          %s678 = sshll.u32 %s664, 4
          %s679 = int_to_ptr.vmem [resolvable:$true] %s678
          %681 = dma.vmem_to_hbm [thread:$0]  %s679, 128, %s676, %s661
        $region56: #{tpu_custom_call.1} parent=31 // pred_fallthru
          _
        // Predicated region
        $region57: #{tpu_custom_call.1} parent=31 // pred_check
          %p682 = pneg %p166
        $region58: #{tpu_custom_call.1} parent=31 // pred_check_branch
          %684 = sbr.rel (%p682) target = $region60
        $region59: #{tpu_custom_call.1} parent=31 // pred_region
          _
        $region60: #{tpu_custom_call.1} parent=31 // pred_fallthru
          _
      $region32: #{tpu_custom_call.1} parent=5 // pred_fallthru
        _
      %p685 = scmp.le.s32.totalorder 2, %s20
      // Predicated region
      $region61: #{tpu_custom_call.1} parent=5 // pred_check
        %p686 = pneg %p685
      $region62: #{tpu_custom_call.1} parent=5 // pred_check_branch
        %688 = sbr.rel (%p686) target = $region64
      $region63: #{tpu_custom_call.1} parent=5 // pred_region
        %s689 = ssub.s32 %s20, 2
        // Predicated region
        $region65: #{tpu_custom_call.1} parent=63 // pred_check
          %p690 = pneg %p146
        $region66: #{tpu_custom_call.1} parent=63 // pred_check_branch
          %692 = sbr.rel (%p690) target = $region68
        $region67: #{tpu_custom_call.1} parent=63 // pred_region
          %s693 = sand.u32 %s131, 1
          %s694 = scalar_lea.sflag [#allocation6], %s693
          %s695 = sand.u32 %s131, 1
          %s696 = smul.addr %s695, 8
          %s697 = scalar_lea.vmem [#allocation10], %s696
          %698 = dma.done %s694, 128
        $region68: #{tpu_custom_call.1} parent=63 // pred_fallthru
          _
        // Predicated region
        $region69: #{tpu_custom_call.1} parent=63 // pred_check
          %p699 = pneg %p172
        $region70: #{tpu_custom_call.1} parent=63 // pred_check_branch
          %701 = sbr.rel (%p699) target = $region72
        $region71: #{tpu_custom_call.1} parent=63 // pred_region
          %p702 = scmp.lt.s32.totalorder %s31, 1
          %s703 = scalar_select %p702, %s31, 1
          %s704 = smul.addr %s703, 8
          %s705 = scalar_lea.vmem %s4, %s704
        $region72: #{tpu_custom_call.1} parent=63 // pred_fallthru
          _
      $region64: #{tpu_custom_call.1} parent=5 // pred_fallthru
        _
    $region6: #{tpu_custom_call.1} parent=1 // loop_footer
      %s24 = sadd.s32 1, %s20
    $region7: #{tpu_custom_call.1} parent=1 // loop_footer_branch
      %19 = sbr.rel target = $region3
    $region8: #{tpu_custom_call.1} parent=1 // loop_exit
      _
    %706 = vsyncpa [#allocation5], 1
    %s707 = scalar_lea.sflag [#allocation5], 1
    %708 = vsyncpa %s707, 1
    %709 = vsyncpa [#allocation8], 1
    %s710 = scalar_lea.sflag [#allocation8], 1
    %711 = vsyncpa %s710, 1
    %712 = vsyncpa [#allocation6], 1
    %s713 = scalar_lea.sflag [#allocation6], 1
    %714 = vsyncpa %s713, 1

</llo_original>
